<compile_context>
chip_gen: v5e
topology: v5e:2x2
jax: 0.10.0
libtpu: 0.0.40
codegen_flags: <defaults>
</compile_context>

<pallas_src>
import functools

import jax
import jax.numpy as jnp
from jax import lax
from jax.experimental import pallas as pl
from jax.experimental.pallas import tpu as pltpu


def _round_up(x, m):
    return ((x + m - 1) // m) * m


def _round_down(x, m):
    return (x // m) * m


def _iou_loss_kernel(x_ref, t_ref, out_ref, inter_acc, total_acc, *,
                     hw, tile_hw, n_class, needs_mask):
    # x_ref:   (1, C, TILE_HW) logits (original HBM dtype)
    # t_ref:   (1, 1, TILE_HW) integer class ids
    # out_ref: (1, C, 1) f32 per-class (1 - IoU), written on the last step
    # inter_acc / total_acc: (C, TILE_HW) f32 elementwise accumulators (VMEM)
    s = pl.program_id(1)
    n_s = pl.num_programs(1)

    @pl.when(s == 0)
    def _():
        inter_acc[...] = jnp.zeros_like(inter_acc)
        total_acc[...] = jnp.zeros_like(total_acc)

    x = x_ref[0].astype(jnp.float32)          # (C, TILE_HW), upcast after load
    t = t_ref[0].astype(jnp.int32)            # (1, TILE_HW)

    if needs_mask:  # static: only emitted when hw is not a tile multiple
        lane = lax.broadcasted_iota(jnp.int32, (1, tile_hw), 1)
        valid = (s * tile_hw + lane) < hw     # (1, TILE_HW) bool
        # Sentinel -1 never matches a class id -> padded lanes never hit the
        # one-hot compare (garbage target bytes can't alias class 0).
        t = jnp.where(valid, t, -1)

    # softmax over the channel axis (dim=1 in NCHW == axis 0 of the tile)
    m = jnp.max(x, axis=0, keepdims=True)
    e = jnp.exp(x - m)
    inv = pl.reciprocal(jnp.sum(e, axis=0, keepdims=True), approx=False)
    soft = e * inv                            # (C, TILE_HW)
    if needs_mask:
        # select (not multiply): NaN/Inf garbage in padded lanes can't leak.
        soft = jnp.where(valid, soft, 0.0)

    ch = lax.broadcasted_iota(jnp.int32, (n_class, tile_hw), 0)
    eq = ch == t                              # (C, TILE_HW) bool "one-hot"

    # Pure elementwise accumulation; cross-lane reduction deferred to epilogue.
    inter_acc[...] += jnp.where(eq, soft, 0.0)          # soft * onehot
    total_acc[...] += jnp.where(eq, soft + 1.0, soft)   # soft + onehot

    @pl.when(s == n_s - 1)
    def _():
        inter = jnp.sum(inter_acc[...], axis=1, keepdims=True)   # (C, 1)
        total = jnp.sum(total_acc[...], axis=1, keepdims=True)   # (C, 1)
        union = total - inter
        eps = jnp.float32(1e-24)
        per_class = 1.0 - (inter + eps) / (union + eps)          # (C, 1)
        out_ref[...] = per_class[None]                           # (1, C, 1)


def iou_loss(outputs, targets, weight=None, *, max_tile_hw=16384,
             block_bytes=2 * 1024 * 1024):
    """outputs: (B, C, H, W) logits (any float dtype); targets: (B, H, W)
    integer class ids in [0, C); weight: (C,) class weights (None -> ones).
    Returns scalar float32 loss matching PyTorch IoULoss.forward."""
    B, C, H, W = outputs.shape
    hw = H * W

    if weight is None:
        weight = jnp.ones((C,), dtype=jnp.float32)

    itemsize_x = jnp.dtype(outputs.dtype).itemsize
    # lane-dense spatial tile: multiple of 128, logits block ~block_bytes
    tile = max(128, _round_down(block_bytes // (C * itemsize_x), 128))
    tile = min(tile, max_tile_hw, _round_up(hw, 128))
    num_s = pl.cdiv(hw, tile)
    needs_mask = (hw % tile) != 0

    x = outputs.reshape(B, C, hw)            # keep HBM dtype on the wire
    t = targets.reshape(B, 1, hw)            # keep narrow int dtype on the wire
    if not jnp.issubdtype(t.dtype, jnp.integer):
        t = t.astype(jnp.int32)
    itemsize_t = jnp.dtype(t.dtype).itemsize

    kernel = functools.partial(
        _iou_loss_kernel, hw=hw, tile_hw=tile, n_class=C, needs_mask=needs_mask)

    cost = pl.CostEstimate(
        flops=int(10 * B * C * hw),
        transcendentals=int(B * C * hw),
        bytes_accessed=int(B * C * hw * itemsize_x + B * hw * itemsize_t
                           + B * C * 4),
    )

    per_class = pl.pallas_call(
        kernel,
        out_shape=jax.ShapeDtypeStruct((B, C, 1), jnp.float32),
        grid_spec=pltpu.PrefetchScalarGridSpec(
            num_scalar_prefetch=0,
            grid=(B, num_s),
            in_specs=[
                pl.BlockSpec((1, C, tile), lambda b, s: (b, 0, s)),
                pl.BlockSpec((1, 1, tile), lambda b, s: (b, 0, s)),
            ],
            out_specs=pl.BlockSpec((1, C, 1), lambda b, s: (b, 0, 0)),
            scratch_shapes=[
                pltpu.VMEM((C, tile), jnp.float32),   # inter accumulator
                pltpu.VMEM((C, tile), jnp.float32),   # total accumulator
            ],
        ),
        compiler_params=pltpu.CompilerParams(
            dimension_semantics=("parallel", "arbitrary"),
            vmem_limit_bytes=32 * 1024 * 1024,
        ),
        cost_estimate=cost,
    )(x, t)

    per_class = per_class.reshape(B, C)
    w = weight.reshape(1, C).astype(jnp.float32)
    return jnp.mean(w * per_class)


def _iou_loss_ref(outputs, targets, weight):
    # Pure-JAX reference mirroring the PyTorch module (correctness check).
    B, C, H, W = outputs.shape
    soft = jax.nn.softmax(outputs.astype(jnp.float32), axis=1)
    onehot = jax.nn.one_hot(targets, C, axis=1, dtype=jnp.float32)
    inter = jnp.sum(soft * onehot, axis=(2, 3))
    total = jnp.sum(soft + onehot, axis=(2, 3))
    union = total - inter
    loss = 1.0 - (inter + 1e-24) / (union + 1e-24)
    loss = weight[None, :].astype(jnp.float32) * loss
    return jnp.mean(loss)


if __name__ == "__main__":
    key = jax.random.PRNGKey(0)
    k1, k2, k3, k4 = jax.random.split(key, 4)

    # Test 1: spatial extent is an exact 128-multiple (no mask path).
    B, C, H, W = 2, 4, 16, 16
    outputs = jax.random.normal(k1, (B, C, H, W), dtype=jnp.float32)
    targets = jax.random.randint(k2, (B, H, W), 0, C, dtype=jnp.int32)
    weight = jnp.ones((C,), dtype=jnp.float32)  # weight=None in module -> ones

    loss = jax.block_until_ready(iou_loss(outputs, targets, weight))
    ref = jax.block_until_ready(_iou_loss_ref(outputs, targets, weight))
    assert jnp.allclose(loss, ref, atol=1e-5, rtol=1e-5), (loss, ref)

    # Test 2: ragged spatial extent exercises the in-kernel valid-lane mask
    # (no wrapper padding; the last block overhangs the array).
    B2, C2, H2, W2 = 2, 5, 10, 17
    outputs2 = jax.random.normal(k3, (B2, C2, H2, W2), dtype=jnp.float32)
    targets2 = jax.random.randint(k4, (B2, H2, W2), 0, C2, dtype=jnp.int32)
    weight2 = jnp.ones((C2,), dtype=jnp.float32)

    loss2 = jax.block_until_ready(iou_loss(outputs2, targets2, weight2))
    ref2 = jax.block_until_ready(_iou_loss_ref(outputs2, targets2, weight2))
    assert jnp.allclose(loss2, ref2, atol=1e-5, rtol=1e-5), (loss2, ref2)

    print("KERNEL_OK")
</pallas_src>

<mosaic_0001>
module attributes {stable_mosaic.version = 11 : i64} {
  func.func @_iou_loss_kernel(%arg0: i32, %arg1: i32, %arg2: memref<1x4x256xf32, #tpu.memory_space<vmem>>, %arg3: memref<1x1x256xi32, #tpu.memory_space<vmem>>, %arg4: memref<1x4x1xf32, #tpu.memory_space<vmem>>, %arg5: memref<4x256xf32, #tpu.memory_space<vmem>>, %arg6: memref<4x256xf32, #tpu.memory_space<vmem>>) attributes {dimension_semantics = [#tpu.dimension_semantics<parallel>, #tpu.dimension_semantics<arbitrary>], iteration_bounds = array<i64: 2, 1>, scalar_prefetch = 0 : i64, scratch_operands = 2 : i64, tpu.core_type = #tpu.core_type<tc>, window_params = [{transform_indices = @transform_0, window_bounds = array<i64: 1, 4, 256>}, {transform_indices = @transform_1, window_bounds = array<i64: 1, 1, 256>}, {transform_indices = @transform_2, window_bounds = array<i64: 1, 4, 1>}]} {
    %c0_i32 = arith.constant 0 : i32
    %0 = arith.cmpi eq, %arg1, %c0_i32 : i32
    %1 = arith.extui %0 : i1 to i32
    %c0_i32_0 = arith.constant 0 : i32
    %2 = arith.cmpi ne, %1, %c0_i32_0 : i32
    scf.if %2 {
      %cst_19 = arith.constant 0.000000e+00 : f32
      %34 = vector.broadcast %cst_19 : f32 to vector<4x256xf32>
      %c0_20 = arith.constant 0 : index
      %c0_21 = arith.constant 0 : index
      %35 = vector.load %arg5[%c0_20, %c0_21] : memref<4x256xf32, #tpu.memory_space<vmem>>, vector<4x256xf32>
      tpu.vector_store %arg5[%c0_20, %c0_21], %34 {strides = array<i32>} : memref<4x256xf32, #tpu.memory_space<vmem>>, vector<4x256xf32>,
      %cst_22 = arith.constant 0.000000e+00 : f32
      %36 = vector.broadcast %cst_22 : f32 to vector<4x256xf32>
      %c0_23 = arith.constant 0 : index
      %c0_24 = arith.constant 0 : index
      %37 = vector.load %arg6[%c0_23, %c0_24] : memref<4x256xf32, #tpu.memory_space<vmem>>, vector<4x256xf32>
      tpu.vector_store %arg6[%c0_23, %c0_24], %36 {strides = array<i32>} : memref<4x256xf32, #tpu.memory_space<vmem>>, vector<4x256xf32>,
    } else {
    }
    %c0 = arith.constant 0 : index
    %c0_1 = arith.constant 0 : index
    %c0_2 = arith.constant 0 : index
    %3 = vector.load %arg2[%c0, %c0_1, %c0_2] : memref<1x4x256xf32, #tpu.memory_space<vmem>>, vector<1x4x256xf32>
    %4 = vector.shape_cast %3 : vector<1x4x256xf32> to vector<4x256xf32>
    %c0_3 = arith.constant 0 : index
    %c0_4 = arith.constant 0 : index
    %c0_5 = arith.constant 0 : index
    %5 = vector.load %arg3[%c0_3, %c0_4, %c0_5] : memref<1x1x256xi32, #tpu.memory_space<vmem>>, vector<1x1x256xi32>
    %6 = vector.shape_cast %5 : vector<1x1x256xi32> to vector<1x256xi32>
    %cst = arith.constant dense<0xFF800000> : vector<256xf32>
    %7 = vector.multi_reduction <maximumf>, %4, %cst [0] : vector<4x256xf32> to vector<256xf32>
    %8 = vector.shape_cast %7 : vector<256xf32> to vector<1x256xf32>
    %9 = vector.broadcast %8 : vector<1x256xf32> to vector<4x256xf32>
    %10 = arith.subf %4, %9 : vector<4x256xf32>
    %11 = math.exp %10 : vector<4x256xf32>
    %cst_6 = arith.constant dense<0.000000e+00> : vector<256xf32>
    %12 = vector.multi_reduction <add>, %11, %cst_6 [0] : vector<4x256xf32> to vector<256xf32>
    %13 = vector.shape_cast %12 : vector<256xf32> to vector<1x256xf32>
    %14 = tpu.reciprocal %13 : vector<1x256xf32> -> vector<1x256xf32>
    %15 = vector.broadcast %14 : vector<1x256xf32> to vector<4x256xf32>
    %16 = arith.mulf %11, %15 : vector<4x256xf32>
    %17 = tpu.iota {dimensions = array<i32: 0>} : vector<4x256xi32>
    %18 = vector.broadcast %6 : vector<1x256xi32> to vector<4x256xi32>
    %19 = arith.cmpi eq, %17, %18 : vector<4x256xi32>
    %c0_7 = arith.constant 0 : index
    %c0_8 = arith.constant 0 : index
    %20 = vector.load %arg5[%c0_7, %c0_8] : memref<4x256xf32, #tpu.memory_space<vmem>>, vector<4x256xf32>
    %cst_9 = arith.constant 0.000000e+00 : f32
    %21 = vector.broadcast %cst_9 : f32 to vector<4x256xf32>
    %22 = arith.select %19, %16, %21 : vector<4x256xi1>, vector<4x256xf32>
    %23 = arith.addf %20, %22 : vector<4x256xf32>
    %c0_10 = arith.constant 0 : index
    %c0_11 = arith.constant 0 : index
    %24 = vector.load %arg5[%c0_10, %c0_11] : memref<4x256xf32, #tpu.memory_space<vmem>>, vector<4x256xf32>
    tpu.vector_store %arg5[%c0_10, %c0_11], %23 {strides = array<i32>} : memref<4x256xf32, #tpu.memory_space<vmem>>, vector<4x256xf32>,
    %c0_12 = arith.constant 0 : index
    %c0_13 = arith.constant 0 : index
    %25 = vector.load %arg6[%c0_12, %c0_13] : memref<4x256xf32, #tpu.memory_space<vmem>>, vector<4x256xf32>
    %cst_14 = arith.constant 1.000000e+00 : f32
    %26 = vector.broadcast %cst_14 : f32 to vector<4x256xf32>
    %27 = arith.addf %16, %26 : vector<4x256xf32>
    %28 = arith.select %19, %27, %16 : vector<4x256xi1>, vector<4x256xf32>
    %29 = arith.addf %25, %28 : vector<4x256xf32>
    %c0_15 = arith.constant 0 : index
    %c0_16 = arith.constant 0 : index
    %30 = vector.load %arg6[%c0_15, %c0_16] : memref<4x256xf32, #tpu.memory_space<vmem>>, vector<4x256xf32>
    tpu.vector_store %arg6[%c0_15, %c0_16], %29 {strides = array<i32>} : memref<4x256xf32, #tpu.memory_space<vmem>>, vector<4x256xf32>,
    %c0_i32_17 = arith.constant 0 : i32
    %31 = arith.cmpi eq, %arg1, %c0_i32_17 : i32
    %32 = arith.extui %31 : i1 to i32
    %c0_i32_18 = arith.constant 0 : i32
    %33 = arith.cmpi ne, %32, %c0_i32_18 : i32
    scf.if %33 {
      %c0_19 = arith.constant 0 : index
      %c0_20 = arith.constant 0 : index
      %34 = vector.load %arg5[%c0_19, %c0_20] : memref<4x256xf32, #tpu.memory_space<vmem>>, vector<4x256xf32>
      %cst_21 = arith.constant dense<0.000000e+00> : vector<4xf32>
      %35 = vector.multi_reduction <add>, %34, %cst_21 [1] : vector<4x256xf32> to vector<4xf32>
      %36 = vector.shape_cast %35 : vector<4xf32> to vector<4x1xf32>
      %c0_22 = arith.constant 0 : index
      %c0_23 = arith.constant 0 : index
      %37 = vector.load %arg6[%c0_22, %c0_23] : memref<4x256xf32, #tpu.memory_space<vmem>>, vector<4x256xf32>
      %cst_24 = arith.constant dense<0.000000e+00> : vector<4xf32>
      %38 = vector.multi_reduction <add>, %37, %cst_24 [1] : vector<4x256xf32> to vector<4xf32>
      %39 = vector.shape_cast %38 : vector<4xf32> to vector<4x1xf32>
      %40 = arith.subf %39, %36 : vector<4x1xf32>
      %cst_25 = arith.constant 1.000000e-24 : f32
      %41 = vector.broadcast %cst_25 : f32 to vector<4x1xf32>
      %42 = arith.addf %36, %41 : vector<4x1xf32>
      %cst_26 = arith.constant 1.000000e-24 : f32
      %43 = vector.broadcast %cst_26 : f32 to vector<4x1xf32>
      %44 = arith.addf %40, %43 : vector<4x1xf32>
      %45 = arith.divf %42, %44 : vector<4x1xf32>
      %cst_27 = arith.constant 1.000000e+00 : f32
      %46 = vector.broadcast %cst_27 : f32 to vector<4x1xf32>
      %47 = arith.subf %46, %45 : vector<4x1xf32>
      %48 = vector.shape_cast %47 : vector<4x1xf32> to vector<1x4x1xf32>
      %c0_28 = arith.constant 0 : index
      %c0_29 = arith.constant 0 : index
      %c0_30 = arith.constant 0 : index
      %49 = vector.load %arg4[%c0_28, %c0_29, %c0_30] : memref<1x4x1xf32, #tpu.memory_space<vmem>>, vector<1x4x1xf32>
      tpu.vector_store %arg4[%c0_28, %c0_29, %c0_30], %48 {strides = array<i32>} : memref<1x4x1xf32, #tpu.memory_space<vmem>>, vector<1x4x1xf32>,
    } else {
    }
    return
  }
  func.func @transform_0(%arg0: i32, %arg1: i32) -> (i32, i32, i32) {
    %c0_i32 = arith.constant 0 : i32
    %c0_i32_0 = arith.constant 0 : i32
    return %arg0, %c0_i32, %arg1 : i32, i32, i32
  }
  func.func @transform_1(%arg0: i32, %arg1: i32) -> (i32, i32, i32) {
    %c0_i32 = arith.constant 0 : i32
    %c0_i32_0 = arith.constant 0 : i32
    return %arg0, %c0_i32, %arg1 : i32, i32, i32
  }
  func.func @transform_2(%arg0: i32, %arg1: i32) -> (i32, i32, i32) {
    %c0_i32 = arith.constant 0 : i32
    %c0_i32_0 = arith.constant 0 : i32
    %c0_i32_1 = arith.constant 0 : i32
    return %arg0, %c0_i32, %c0_i32_0 : i32, i32, i32
  }
}

</mosaic_0001>

<llo_original>
// kernel: tpu_custom_call.1
$region0: #{tpu_custom_call.1}
  #allocation0 [shape = 'u32[]', space=smem, size = 0x4, offset = 0x4, fixed_abs, tag = 'smem constant byte address 0x4 - core index']
  #allocation1 [shape = 'u32[72,128]{1,0:T(1,128)}', space=vmem, size = 0x9000, scoped, tag = 'internal scratch']
  #allocation2 [shape = 'f32[4,256]{1,0:T(4,128)}', space=vmem, size = 0x1000, scoped, tag = 'scratch operand']
  #allocation3 [shape = 'f32[4,256]{1,0:T(4,128)}', space=vmem, size = 0x1000, scoped, tag = 'scratch operand']
  %s0 = inlined_call_operand.hbm [shape: f32[2,4,256], index: 0, kind: input, shape index: {}]
  %s1 = inlined_call_operand.hbm [shape: s32[2,1,256], index: 1, kind: input, shape index: {}]
  %s2 = inlined_call_operand.vmem [shape: f32[2,4,1], index: 2, kind: output, shape index: {}]
  %s3 = sld [smem:[#allocation0]]
  $region57: #{tpu_custom_call.1} parent=0
    _
  %s5 = ssub.s32 1, %s3
  %s6 = scalar_select 0, %s5, %s3
  $region1: #{tpu_custom_call.1} parent=0
    #allocation4 [shape = 'u8[8192]{0}', space=vmem, size = 0x2000, scoped, tag = 'input window, operand 0']
    #allocation5 [shape = 's32[2]{0}', space=sflag, size = 0x8, scoped, tag = 'scoped memory for tpu_custom_call.1']
    #allocation6 [shape = 'u8[2048]{0}', space=vmem, size = 0x800, scoped, tag = 'input window, operand 1']
    #allocation7 [shape = 's32[2]{0}', space=sflag, size = 0x8, scoped, tag = 'scoped memory for tpu_custom_call.1']
    %7 = vsyncpa [#allocation5], 0
    %s8 = scalar_lea.sflag [#allocation5], 1
    %9 = vsyncpa %s8, 0
    %10 = vsyncpa [#allocation7], 0
    %s11 = scalar_lea.sflag [#allocation7], 1
    %12 = vsyncpa %s11, 0
    loop: start=0, step=1, limit=4
    $region2: #{tpu_custom_call.1} parent=1 // loop_pre_header
      _
    $region3: #{tpu_custom_call.1} parent=1 // loop_header
      %s14 = sphi 0, %s18
      %p15 = scmp.ge.s32.totalorder %s14, 4
      %s21 = sphi 0, %s33
      %s22 = sphi 0, %s29
      %s23 = sphi 0, %s21
      %s24 = sphi 0, %s22
      %s25 = sphi 0, %s23
      %s26 = sphi 0, %s24
      %s38 = sphi 0, %s40
      %s41 = sphi 0, %s38
      %s42 = sphi 0, %s41
      %s58 = sphi 0, %s42
      %s66 = sphi 0, %s68
      %s69 = sphi 0, %s66
      %s70 = sphi 0, %s69
      %s86 = sphi 0, %s70
      %s92 = sphi 0, %s94
      %s95 = sphi 0, %s92
      %s96 = sphi 0, %s95
      %s112 = sphi 0, %s96
    $region4: #{tpu_custom_call.1} parent=1 // loop_header_branch
      %17 = sbr.rel (%p15) target = $region8
    $region5: #{tpu_custom_call.1} parent=1 // loop_body
      %s19 = ssub.s32 %s14, 1
      %s20 = ssub.s32 %s14, 2
      %s27 = sadd.s32 1, %s22
      %p28 = scmp.ge.s32.totalorder %s27, 1
      %s29 = scalar_select %p28, 0, %s27
      %s30 = sadd.s32 1, %s21
      %s31 = scalar_select %p28, %s30, %s21
      %p32 = scmp.ge.s32.totalorder %s31, 2
      %s33 = scalar_select %p32, 0, %s31
      %s34 = ssub.s32 %s21, %s33
      %s35 = ssub.s32 %s22, %s29
      %s36 = sor.u32 %s34, %s35
      %p37 = scmp.eq.s32.totalorder %s36, 0
      %s39 = sadd.s32 %s38, 1
      %s40 = scalar_select %p37, %s38, %s39
      %p43 = pneg %p37
      %p44 = scmp.eq.s32.totalorder %s14, 1
      %p45 = por %p43, %p44
      %p46 = scmp.ne.s32.totalorder %s38, %s41
      %p47 = scmp.eq.s32.totalorder %s14, 0
      %p48 = por %p46, %p47
      %p49 = scmp.ne.s32.totalorder %s38, %s41
      %p50 = scmp.eq.s32.totalorder %s19, 1
      %p51 = por %p49, %p50
      %p52 = scmp.ne.s32.totalorder %s41, %s42
      %p53 = scmp.eq.s32.totalorder %s19, 0
      %p54 = por %p52, %p53
      %p55 = scmp.ne.s32.totalorder %s41, %s42
      %p56 = scmp.eq.s32.totalorder %s20, 1
      %p57 = por %p55, %p56
      %p59 = scmp.ne.s32.totalorder %s42, %s58
      %p60 = scmp.eq.s32.totalorder %s20, 0
      %p61 = por %p59, %p60
      %s62 = ssub.s32 %s21, %s33
      %s63 = ssub.s32 %s22, %s29
      %s64 = sor.u32 %s62, %s63
      %p65 = scmp.eq.s32.totalorder %s64, 0
      %s67 = sadd.s32 %s66, 1
      %s68 = scalar_select %p65, %s66, %s67
      %p71 = pneg %p65
      %p72 = scmp.eq.s32.totalorder %s14, 1
      %p73 = por %p71, %p72
      %p74 = scmp.ne.s32.totalorder %s66, %s69
      %p75 = scmp.eq.s32.totalorder %s14, 0
      %p76 = por %p74, %p75
      %p77 = scmp.ne.s32.totalorder %s66, %s69
      %p78 = scmp.eq.s32.totalorder %s19, 1
      %p79 = por %p77, %p78
      %p80 = scmp.ne.s32.totalorder %s69, %s70
      %p81 = scmp.eq.s32.totalorder %s19, 0
      %p82 = por %p80, %p81
      %p83 = scmp.ne.s32.totalorder %s69, %s70
      %p84 = scmp.eq.s32.totalorder %s20, 1
      %p85 = por %p83, %p84
      %p87 = scmp.ne.s32.totalorder %s70, %s86
      %p88 = scmp.eq.s32.totalorder %s20, 0
      %p89 = por %p87, %p88
      %s90 = ssub.s32 %s21, %s33
      %p91 = scmp.eq.s32.totalorder %s90, 0
      %s93 = sadd.s32 %s92, 1
      %s94 = scalar_select %p91, %s92, %s93
      %p97 = pneg %p91
      %p98 = scmp.eq.s32.totalorder %s14, 1
      %p99 = por %p97, %p98
      %p100 = scmp.ne.s32.totalorder %s92, %s95
      %p101 = scmp.eq.s32.totalorder %s14, 0
      %p102 = por %p100, %p101
      %p103 = scmp.ne.s32.totalorder %s92, %s95
      %p104 = scmp.eq.s32.totalorder %s19, 1
      %p105 = por %p103, %p104
      %p106 = scmp.ne.s32.totalorder %s95, %s96
      %p107 = scmp.eq.s32.totalorder %s19, 0
      %p108 = por %p106, %p107
      %p109 = scmp.ne.s32.totalorder %s95, %s96
      %p110 = scmp.eq.s32.totalorder %s20, 1
      %p111 = por %p109, %p110
      %p113 = scmp.ne.s32.totalorder %s96, %s112
      %p114 = scmp.eq.s32.totalorder %s20, 0
      %p115 = por %p113, %p114
      %p116 = scmp.le.s32.totalorder 1, %s14
      %p117 = scmp.lt.s32.totalorder %s14, 3
      %p118 = pnand %p116, %p117
      %p119 = pneg %p118
      // Predicated region
      $region9: #{tpu_custom_call.1} parent=5 // pred_check
        _
      $region10: #{tpu_custom_call.1} parent=5 // pred_check_branch
        %121 = sbr.rel (%p118) target = $region12
      $region11: #{tpu_custom_call.1} parent=5 // pred_region
        %s122 = ssub.s32 %s14, 1
      $region12: #{tpu_custom_call.1} parent=5 // pred_fallthru
        _
      %p123 = scmp.lt.s32.totalorder %s14, 2
      // Predicated region
      $region13: #{tpu_custom_call.1} parent=5 // pred_check
        %p124 = pneg %p123
      $region14: #{tpu_custom_call.1} parent=5 // pred_check_branch
        %126 = sbr.rel (%p124) target = $region16
      $region15: #{tpu_custom_call.1} parent=5 // pred_region
        // Predicated region
        $region17: #{tpu_custom_call.1} parent=15 // pred_check
          %p127 = pneg %p48
        $region18: #{tpu_custom_call.1} parent=15 // pred_check_branch
          %129 = sbr.rel (%p127) target = $region20
        $region19: #{tpu_custom_call.1} parent=15 // pred_region
          %s130 = sand.u32 %s38, 1
          %s131 = scalar_lea.sflag [#allocation5], %s130
          %s132 = sand.u32 %s38, 1
          %s133 = smul.addr %s132, 8
          %s134 = scalar_lea.vmem [#allocation4], %s133
          %s135 = smul.u32 2, %s22
          %137 = vsyncadd %s131, 0
          %s138 = smul.addr %s21, 2
          %s139 = sadd.s32 %s135, %s138
          %s140 = smul.addr %s139, 4
          %s141 = scalar_lea.hbm %s0, %s140
          %s143 = sshll.u32 %s141, 4
          %s144 = int_to_ptr.hbm [resolvable:$true] %s143
          %s145 = sshll.u32 %s134, 4
          %s146 = int_to_ptr.vmem [resolvable:$true] %s145
          %148 = dma.hbm_to_vmem [thread:$0]  %s144, 128, %s146, %s131
        $region20: #{tpu_custom_call.1} parent=15 // pred_fallthru
          _
        // Predicated region
        $region21: #{tpu_custom_call.1} parent=15 // pred_check
          %p149 = pneg %p76
        $region22: #{tpu_custom_call.1} parent=15 // pred_check_branch
          %151 = sbr.rel (%p149) target = $region24
        $region23: #{tpu_custom_call.1} parent=15 // pred_region
          %s152 = sand.u32 %s66, 1
          %s153 = scalar_lea.sflag [#allocation7], %s152
          %s154 = sand.u32 %s66, 1
          %s155 = smul.addr %s154, 2
          %s156 = scalar_lea.vmem [#allocation6], %s155
          %s157 = smul.u32 2, %s22
          %159 = vsyncadd %s153, 0
          %s160 = smul.addr %s21, 2
          %s161 = sadd.s32 %s157, %s160
          %s162 = scalar_lea.hbm %s1, %s161
          %s164 = sshll.u32 %s162, 4
          %s165 = int_to_ptr.hbm [resolvable:$true] %s164
          %s166 = sshll.u32 %s156, 4
          %s167 = int_to_ptr.vmem [resolvable:$true] %s166
          %169 = dma.hbm_to_vmem [thread:$0]  %s165, 32, %s167, %s153
        $region24: #{tpu_custom_call.1} parent=15 // pred_fallthru
          _
      $region16: #{tpu_custom_call.1} parent=5 // pred_fallthru
        _
      %p170 = scmp.le.s32.totalorder 1, %s14
      %p171 = scmp.lt.s32.totalorder %s14, 3
      %p172 = pnand %p170, %p171
      %p173 = pneg %p172
      // Predicated region
      $region25: #{tpu_custom_call.1} parent=5 // pred_check
        _
      $region26: #{tpu_custom_call.1} parent=5 // pred_check_branch
        %175 = sbr.rel (%p172) target = $region28
      $region27: #{tpu_custom_call.1} parent=5 // pred_region
        %s176 = ssub.s32 %s14, 1
        %s177 = sand.u32 %s41, 1
        %s178 = scalar_lea.sflag [#allocation5], %s177
        %s179 = sand.u32 %s41, 1
        %s180 = smul.addr %s179, 8
        %s181 = scalar_lea.vmem [#allocation4], %s180
        // Predicated region
        $region29: #{tpu_custom_call.1} parent=27 // pred_check
          %p182 = pneg %p54
        $region30: #{tpu_custom_call.1} parent=27 // pred_check_branch
          %184 = sbr.rel (%p182) target = $region32
        $region31: #{tpu_custom_call.1} parent=27 // pred_region
          %186 = dma.done %s178, 128
        $region32: #{tpu_custom_call.1} parent=27 // pred_fallthru
          _
        %s187 = sand.u32 %s69, 1
        %s188 = scalar_lea.sflag [#allocation7], %s187
        %s189 = sand.u32 %s69, 1
        %s190 = smul.addr %s189, 2
        %s191 = scalar_lea.vmem [#allocation6], %s190
        // Predicated region
        $region33: #{tpu_custom_call.1} parent=27 // pred_check
          %p192 = pneg %p82
        $region34: #{tpu_custom_call.1} parent=27 // pred_check_branch
          %194 = sbr.rel (%p192) target = $region36
        $region35: #{tpu_custom_call.1} parent=27 // pred_region
          %196 = dma.done %s188, 32
        $region36: #{tpu_custom_call.1} parent=27 // pred_fallthru
          _
        %s197 = sand.u32 %s41, 1
        %s198 = scalar_lea.sflag [#allocation5], %s197
        %s199 = sand.u32 %s41, 1
        %s200 = smul.addr %s199, 8
        %s201 = scalar_lea.vmem [#allocation4], %s200
        %p202 = pneg %p54
        %p203 = pneg %p51
        %s204 = sand.u32 %s69, 1
        %s205 = scalar_lea.sflag [#allocation7], %s204
        %s206 = sand.u32 %s69, 1
        %s207 = smul.addr %s206, 2
        %s208 = scalar_lea.vmem [#allocation6], %s207
        %p209 = pneg %p82
        %p210 = pneg %p79
        %p211 = pneg %p108
        %p212 = pneg %p105
        %p213 = scmp.lt.s32.totalorder %s23, 1
        %s214 = scalar_select %p213, %s23, 1
        %s215 = smul.addr %s214, 4
        %s216 = scalar_lea.vmem %s2, %s215
        %s217 = smul.u32 2, %s24
        %s218 = smul.u32 2, %s24
        %p219 = scmp.lt.s32.totalorder %s23, 1
        %s220 = scalar_select %p219, %s23, 1
        %s221 = smul.addr %s220, 4
        %s222 = scalar_lea.vmem %s2, %s221
        %p223 = scmp.eq.s32.totalorder %s24, 0
        // Predicated region
        $region37: #{tpu_custom_call.1} parent=27 // pred_check
          %p224 = pneg %p223
        $region38: #{tpu_custom_call.1} parent=27 // pred_check_branch
          %226 = sbr.rel (%p224) target = $region40
        $region39: #{tpu_custom_call.1} parent=27 // pred_region
          %227 = vst [vmem:[#allocation2] sm:$0xff] 0.0
          %228 = vst [vmem:[#allocation3] sm:$0xff] 0.0
        $region40: #{tpu_custom_call.1} parent=27 // pred_fallthru
          _
        %v229 = vld [vmem:[%s181] sm:$0xff]
        %v230 = vld [vmem:[%s191] sm:$0x3]
        %232 = vst [vmem:[#allocation1] ss:$2 sm:$0xff] %v229
        %v233 = vld.sshfl [vmem:[#allocation1] sm:$0xff pattern:$0x75316420]
        %v234 = vld.sshfl [vmem:[#allocation1 + $0x8] sm:$0xff pattern:$0x75316420]
        %vm237 = vcmask 1043456
        %v238 = vsel %vm237, %v233, -inf
        %v239 = vrot.slane %v238, 4
        %v240 = vmax.f32 %v238, %v239
        %v241 = vrot.slane %v240, 2
        %v242 = vmax.f32 %v240, %v241
        %v243 = vrot.slane %v242, 1
        %v244 = vmax.f32 %v242, %v243
        %v245 = vsel %vm237, %v234, -inf
        %v246 = vrot.slane %v245, 4
        %v247 = vmax.f32 %v245, %v246
        %v248 = vrot.slane %v247, 2
        %v249 = vmax.f32 %v247, %v248
        %v250 = vrot.slane %v249, 1
        %v251 = vmax.f32 %v249, %v250
        %v254 = vrot.slane %v251, 4
        %v255 = vsel %vm237, %v244, %v254
        %v257 = vsub.f32 %v229, %v255
        %v258 = vmul.f32 %v257, 1.442695
        %v259 = vpow.pop %v258
        %261 = vst [vmem:[#allocation1] ss:$2 sm:$0xff] %v259
        %v262 = vld.sshfl [vmem:[#allocation1] sm:$0xff pattern:$0x75316420]
        %v263 = vld.sshfl [vmem:[#allocation1 + $0x8] sm:$0xff pattern:$0x75316420]
        %v266 = vsel %vm237, %v262, 0.0
        %v267 = vrot.slane %v266, 4
        %v268 = vadd.f32 %v266, %v267
        %v269 = vrot.slane %v268, 2
        %v270 = vadd.f32 %v268, %v269
        %v271 = vrot.slane %v270, 1
        %v272 = vadd.f32 %v270, %v271
        %v273 = vsel %vm237, %v263, 0.0
        %v274 = vrot.slane %v273, 4
        %v275 = vadd.f32 %v273, %v274
        %v276 = vrot.slane %v275, 2
        %v277 = vadd.f32 %v275, %v276
        %v278 = vrot.slane %v277, 1
        %v279 = vadd.f32 %v277, %v278
        %v280 = vrcp.pop %v272
        %v281 = vmul.f32 %v272, %v280
        %v282 = vsub.f32 1.0, %v281
        %v283 = vmul.f32 %v280, %v282
        %v284 = vadd.f32 %v280, %v283
        %vm285 = vweird.f32 %v272
        %vm286 = vweird.f32 %v280
        %vm287 = vmor %vm285, %vm286
        %v288 = vsel %vm287, %v280, %v284
        %v289 = vand.u32 2147483647, %v272
        %vm290 = vcmp.eq.f32.partialorder %v289, 8.507059e+37
        %v291 = vand.u32 %v272, 2147483648
        %v292 = vor.u32 1.1754944e-38, %v291
        %v293 = vsel %vm290, %v292, %v288
        %v294 = vrcp.pop %v279
        %v295 = vmul.f32 %v279, %v294
        %v296 = vsub.f32 1.0, %v295
        %v297 = vmul.f32 %v294, %v296
        %v298 = vadd.f32 %v294, %v297
        %vm299 = vweird.f32 %v279
        %vm300 = vweird.f32 %v294
        %vm301 = vmor %vm299, %vm300
        %v302 = vsel %vm301, %v294, %v298
        %v303 = vand.u32 2147483647, %v279
        %vm304 = vcmp.eq.f32.partialorder %v303, 8.507059e+37
        %v305 = vand.u32 %v279, 2147483648
        %v306 = vor.u32 1.1754944e-38, %v305
        %v307 = vsel %vm304, %v306, %v302
        %v310 = vrot.slane %v307, 4
        %v311 = vsel %vm237, %v293, %v310
        %v313 = vmul.f32 %v259, %v311
        %v314 = vlaneseq
        %v315 = vshrl.u32 %v314, 7
        %v316 = vperm.slane %v230, 0
        %v317 = vperm.slane %v230, 1
        %vm318 = vcmp.eq.s32.totalorder %v315, %v316
        %vm319 = vcmp.eq.s32.totalorder %v315, %v317
        %v320 = vld [vmem:[#allocation2] sm:$0xff]
        %322 = vst [vmem:[#allocation1] ss:$2 sm:$0xff] %v313
        %v323 = vld.sshfl [vmem:[#allocation1] sm:$0xff pattern:$0x75316420]
        %v324 = vld.sshfl [vmem:[#allocation1 + $0x8] sm:$0xff pattern:$0x75316420]
        %v327 = vsel %vm318, %v323, 0.0
        %v328 = vsel %vm319, %v324, 0.0
        %v331 = vrot.slane %v328, 4
        %v332 = vsel %vm237, %v327, %v331
        %v334 = vadd.f32 %v320, %v332
        %335 = vst [vmem:[#allocation2] sm:$0xff] %v334
        %v336 = vld [vmem:[#allocation3] sm:$0xff]
        %v337 = vadd.f32 %v313, 1.0
        %339 = vst [vmem:[#allocation1] ss:$2 sm:$0xff] %v337
        %v340 = vld.sshfl [vmem:[#allocation1] sm:$0xff pattern:$0x75316420]
        %v341 = vld.sshfl [vmem:[#allocation1 + $0x8] sm:$0xff pattern:$0x75316420]
        %344 = vst [vmem:[#allocation1] ss:$2 sm:$0xff] %v313
        %v345 = vld.sshfl [vmem:[#allocation1] sm:$0xff pattern:$0x75316420]
        %v346 = vld.sshfl [vmem:[#allocation1 + $0x8] sm:$0xff pattern:$0x75316420]
        %v349 = vsel %vm318, %v340, %v345
        %v350 = vsel %vm319, %v341, %v346
        %v353 = vrot.slane %v350, 4
        %v354 = vsel %vm237, %v349, %v353
        %v356 = vadd.f32 %v336, %v354
        %357 = vst [vmem:[#allocation3] sm:$0xff] %v356
        // Predicated region
        $region41: #{tpu_custom_call.1} parent=27 // pred_check
          %p358 = pneg %p223
        $region42: #{tpu_custom_call.1} parent=27 // pred_check_branch
          %360 = sbr.rel (%p358) target = $region44
        $region43: #{tpu_custom_call.1} parent=27 // pred_region
          %v361 = vld [vmem:[#allocation2] sm:$0xff]
          %363 = vst [vmem:[#allocation1] ss:$2 sm:$0xff] %v361
          %v364 = vld.sshfl [vmem:[#allocation1] sm:$0xff pattern:$0x75316420]
          %v365 = vld.sshfl [vmem:[#allocation1 + $0x8] sm:$0xff pattern:$0x75316420]
          %v368 = vsel %vm237, %v364, 0.0
          %v369 = vsel %vm237, %v365, 0.0
          %v370 = vadd.f32 %v368, %v369
          %371 = vadd.xlane.f32.xlu0 %v370
          %v372 = vpop.xlane.xlu0 %371
          %v373 = vld [vmem:[#allocation3] sm:$0xff]
          %375 = vst [vmem:[#allocation1] ss:$2 sm:$0xff] %v373
          %v376 = vld.sshfl [vmem:[#allocation1] sm:$0xff pattern:$0x75316420]
          %v377 = vld.sshfl [vmem:[#allocation1 + $0x8] sm:$0xff pattern:$0x75316420]
          %v380 = vsel %vm237, %v376, 0.0
          %v381 = vsel %vm237, %v377, 0.0
          %v382 = vadd.f32 %v380, %v381
          %383 = vadd.xlane.f32.xlu0 %v382
          %v384 = vpop.xlane.xlu0 %383
          %v385 = vsub.f32 %v384, %v372
          %v386 = vadd.f32 %v372, 1e-24
          %v387 = vadd.f32 %v385, 1e-24
          %v388 = vrcp.pop %v387
          %v389 = vmul.f32 %v387, %v388
          %v390 = vsub.f32 1.0, %v389
          %v391 = vmul.f32 %v388, %v390
          %v392 = vadd.f32 %v388, %v391
          %vm393 = vweird.f32 %v387
          %vm394 = vweird.f32 %v388
          %vm395 = vmor %vm393, %vm394
          %v396 = vsel %vm395, %v388, %v392
          %v397 = vand.u32 2147483647, %v387
          %vm398 = vcmp.eq.f32.partialorder %v397, 8.507059e+37
          %v399 = vand.u32 %v387, 2147483648
          %v400 = vor.u32 1.1754944e-38, %v399
          %v401 = vsel %vm398, %v400, %v396
          %v402 = vmul.f32 %v386, %v401
          %v403 = vsub.f32 1.0, %v402
          %vm404 = vcmask 3072
          %405 = vst.msk [vmem:[%s222] sm:$0xf] %vm404, %v403
        $region44: #{tpu_custom_call.1} parent=27 // pred_fallthru
          _
        %p406 = scmp.lt.s32.totalorder %s23, 1
        %s407 = scalar_select %p406, %s23, 1
        %s408 = smul.addr %s407, 4
        %s409 = scalar_lea.vmem %s2, %s408
        // Predicated region
        $region45: #{tpu_custom_call.1} parent=27 // pred_check
          %p410 = pneg %p105
        $region46: #{tpu_custom_call.1} parent=27 // pred_check_branch
          %412 = sbr.rel (%p410) target = $region48
        $region47: #{tpu_custom_call.1} parent=27 // pred_region
          _
        $region48: #{tpu_custom_call.1} parent=27 // pred_fallthru
          _
      $region28: #{tpu_custom_call.1} parent=5 // pred_fallthru
        _
      %p413 = scmp.le.s32.totalorder 2, %s14
      // Predicated region
      $region49: #{tpu_custom_call.1} parent=5 // pred_check
        %p414 = pneg %p413
      $region50: #{tpu_custom_call.1} parent=5 // pred_check_branch
        %416 = sbr.rel (%p414) target = $region52
      $region51: #{tpu_custom_call.1} parent=5 // pred_region
        %s417 = ssub.s32 %s14, 2
        // Predicated region
        $region53: #{tpu_custom_call.1} parent=51 // pred_check
          %p418 = pneg %p111
        $region54: #{tpu_custom_call.1} parent=51 // pred_check_branch
          %420 = sbr.rel (%p418) target = $region56
        $region55: #{tpu_custom_call.1} parent=51 // pred_region
          %p421 = scmp.lt.s32.totalorder %s25, 1
          %s422 = scalar_select %p421, %s25, 1
          %s423 = smul.addr %s422, 4
          %s424 = scalar_lea.vmem %s2, %s423
        $region56: #{tpu_custom_call.1} parent=51 // pred_fallthru
          _
      $region52: #{tpu_custom_call.1} parent=5 // pred_fallthru
        _
    $region6: #{tpu_custom_call.1} parent=1 // loop_footer
      %s18 = sadd.s32 1, %s14
    $region7: #{tpu_custom_call.1} parent=1 // loop_footer_branch
      %13 = sbr.rel target = $region3
    $region8: #{tpu_custom_call.1} parent=1 // loop_exit
      _
    %425 = vsyncpa [#allocation5], 1
    %s426 = scalar_lea.sflag [#allocation5], 1
    %427 = vsyncpa %s426, 1
    %428 = vsyncpa [#allocation7], 1
    %s429 = scalar_lea.sflag [#allocation7], 1
    %430 = vsyncpa %s429, 1

</llo_original>
